<compile_context>
chip_gen: v7x
topology: tpu7x:2x2x1
jax: 0.10.0
libtpu: 0.0.40
codegen_flags: <defaults>
</compile_context>

<pallas_src>
import functools
import math

import jax
import jax.numpy as jnp
from jax import lax
from jax.experimental import pallas as pl
from jax.experimental.pallas import tpu as pltpu

BN_EPS = 1e-5
LEAKY_SLOPE = 0.01
_LANE = 128     # lane width of the packed slab / internal working width
_SUB = 8        # sublane granule
_REP = 8        # replication rows for per-feature vectors (broadcast-free for B<=8)


def _round_up(n, m):
    return (n + m - 1) // m * m


def _leaky_relu(x):
    return jnp.where(x > 0, x, LEAKY_SLOPE * x)


class _Layout:
    """Row offsets of the packed parameter slab (all offsets 8-row aligned)."""

    def __init__(self, state_size, action_size, hidden_in_dim, hidden_out_dim):
        self.S = state_size
        self.A = action_size
        self.H1 = hidden_in_dim
        self.H2 = hidden_out_dim
        self.PW = _round_up(max(hidden_in_dim, hidden_out_dim), _LANE)
        self.s_pad = _round_up(state_size, _SUB)
        self.a_pad = _round_up(action_size, _SUB)

        self.row_w1 = 0                                  # (S, PW)   cols :H1 real
        self.row_w2h = self.row_w1 + self.s_pad          # (PW, PW)  rows :H1, cols :H2 real
        self.row_w2a = self.row_w2h + self.PW            # (a_pad, PW) rows :A, cols :H2
        self.row_w2ao = self.row_w2a + self.a_pad        # (a_pad, PW) rows :A, cols :H2
        row = self.row_w2ao + self.a_pad
        self.row_b1 = row; row += _REP                   # replicated (8, PW) blocks
        self.row_gamma = row; row += _REP
        self.row_beta = row; row += _REP
        self.row_b2 = row; row += _REP
        self.row_w3 = row; row += _REP                   # fc3 weight stored as a row
        self.row_b3 = row; row += _REP                   # scalar b3 in every lane
        self.rows = row


def critic_kernel(x_ref, a_ref, ao_ref, slab_ref, out_ref, *, lo: _Layout):
    B = x_ref.shape[0]
    x = x_ref[...]            # (B, S)
    act = a_ref[...]          # (B, A)
    act_o = ao_ref[...]       # (B, A)

    # ---- static views into the single packed weight slab (one input DMA) ----
    w1 = slab_ref[lo.row_w1:lo.row_w1 + lo.S, :]                  # (S, PW)
    w2h = slab_ref[lo.row_w2h:lo.row_w2h + lo.PW, :]              # (PW, PW)
    w2a_blk = slab_ref[lo.row_w2a:lo.row_w2a + lo.a_pad, :]       # (a_pad, PW)
    w2ao_blk = slab_ref[lo.row_w2ao:lo.row_w2ao + lo.a_pad, :]    # (a_pad, PW)
    w2a = w2a_blk[:lo.A, :] if lo.A < lo.a_pad else w2a_blk       # (A, PW)
    w2ao = w2ao_blk[:lo.A, :] if lo.A < lo.a_pad else w2ao_blk    # (A, PW)

    # Per-feature vectors are replicated across 8 sublanes in the slab, so for
    # B <= 8 they are read with a plain aligned load (no XLU broadcast).
    bb = B if B <= _REP else 1
    b1 = slab_ref[lo.row_b1:lo.row_b1 + bb, :]                    # (bb, PW)
    gamma = slab_ref[lo.row_gamma:lo.row_gamma + bb, :]
    beta = slab_ref[lo.row_beta:lo.row_beta + bb, :]
    b2 = slab_ref[lo.row_b2:lo.row_b2 + bb, :]
    w3r = slab_ref[lo.row_w3:lo.row_w3 + bb, :]                   # fc3 weight row(s)
    b3 = slab_ref[lo.row_b3:lo.row_b3 + bb, :]                    # scalar in every lane

    f32 = jnp.float32

    # ---- fc1 (lane-dense width PW; padded lanes stay exactly 0) ----
    h = jnp.dot(x, w1, preferred_element_type=f32) + b1           # (B, PW)

    # ---- BatchNorm1d, training mode: biased batch stats, two-pass variance ----
    mean = jnp.mean(h, axis=0, keepdims=True)                     # (1, PW)
    d = h - mean
    var = jnp.mean(d * d, axis=0, keepdims=True)                  # (1, PW)
    h1 = _leaky_relu(gamma * (d * lax.rsqrt(var + BN_EPS)) + beta)

    # ---- fc2 on cat(h1, action, action_opp): three-way split matmul ----
    h2 = _leaky_relu(
        jnp.dot(h1, w2h, preferred_element_type=f32)
        + jnp.dot(act, w2a, preferred_element_type=f32)
        + jnp.dot(act_o, w2ao, preferred_element_type=f32)
        + b2)                                                      # (B, PW)

    # ---- fc3 as VPU multiply + cross-lane reduce (no padded weight matrix) ----
    out_ref[...] = jnp.sum(h2 * w3r, axis=-1, keepdims=True) + b3[:, :1]


def critic_forward(x, action, action_opp, params):
    """Fused Critic forward. Single grid-less pallas_call; 4 input DMAs."""
    lo: _Layout = params["layout"]
    slab = params["slab"]
    B = x.shape[0]

    vmem = pl.BlockSpec(memory_space=pltpu.MemorySpace.VMEM)
    flops = int(
        2 * B * lo.S * lo.PW              # fc1
        + 10 * B * lo.PW                  # BN + leaky_relu
        + 2 * B * lo.PW * lo.PW           # fc2 (h1 block)
        + 2 * 2 * B * lo.A * lo.PW        # fc2 (both action blocks)
        + 3 * B * lo.PW)                  # fc3 mul + reduce
    bytes_accessed = int(4 * (x.size + action.size + action_opp.size + slab.size + B))
    cost = pl.CostEstimate(flops=flops, transcendentals=int(lo.PW),
                           bytes_accessed=bytes_accessed)

    return pl.pallas_call(
        functools.partial(critic_kernel, lo=lo),
        out_shape=jax.ShapeDtypeStruct((B, 1), jnp.float32),
        in_specs=[vmem, vmem, vmem, vmem],
        out_specs=vmem,
        cost_estimate=cost,
    )(x, action, action_opp, slab)


def _pack_slab(lo: _Layout, p):
    """Pack all parameters into one (rows, PW) f32 slab, zero-padded."""
    S, A, H1, H2, PW = lo.S, lo.A, lo.H1, lo.H2, lo.PW
    slab = jnp.zeros((lo.rows, PW), jnp.float32)
    slab = slab.at[lo.row_w1:lo.row_w1 + S, :H1].set(p["w1"])
    slab = slab.at[lo.row_w2h:lo.row_w2h + H1, :H2].set(p["w2"][:H1])
    slab = slab.at[lo.row_w2a:lo.row_w2a + A, :H2].set(p["w2"][H1:H1 + A])
    slab = slab.at[lo.row_w2ao:lo.row_w2ao + A, :H2].set(p["w2"][H1 + A:H1 + 2 * A])

    def rep_row(v, width):
        row = jnp.zeros((PW,), jnp.float32).at[:width].set(v)
        return jnp.tile(row[None, :], (_REP, 1))

    slab = slab.at[lo.row_b1:lo.row_b1 + _REP, :].set(rep_row(p["b1"], H1))
    slab = slab.at[lo.row_gamma:lo.row_gamma + _REP, :].set(rep_row(p["gamma"], H1))
    slab = slab.at[lo.row_beta:lo.row_beta + _REP, :].set(rep_row(p["beta"], H1))
    slab = slab.at[lo.row_b2:lo.row_b2 + _REP, :].set(rep_row(p["b2"], H2))
    slab = slab.at[lo.row_w3:lo.row_w3 + _REP, :].set(rep_row(p["w3"][:, 0], H2))
    slab = slab.at[lo.row_b3:lo.row_b3 + _REP, :].set(
        jnp.full((_REP, PW), p["b3"][0], jnp.float32))
    return slab


def init_params(key, state_size, action_size, hidden_in_dim, hidden_out_dim):
    """Deterministic init mirroring PyTorch reset_parameters(). Weights stored
    transposed (in_features, out_features)."""
    lo = _Layout(state_size, action_size, hidden_in_dim, hidden_out_dim)
    k1, k2, k3, kb1, kb2, kb3 = jax.random.split(key, 6)

    lim1 = 1.0 / math.sqrt(hidden_in_dim)    # hidden_init(fc1): weight.size()[0]
    lim2 = 1.0 / math.sqrt(hidden_out_dim)   # hidden_init(fc2)
    lim3 = 0.003

    w1 = jax.random.uniform(k1, (state_size, hidden_in_dim), jnp.float32, -lim1, lim1)
    b1 = jax.random.uniform(kb1, (hidden_in_dim,), jnp.float32, -lim1, lim1)

    fc2_in = hidden_in_dim + 2 * action_size
    w2 = jax.random.uniform(k2, (fc2_in, hidden_out_dim), jnp.float32, -lim2, lim2)
    b2 = jax.random.uniform(kb2, (hidden_out_dim,), jnp.float32, -lim2, lim2)

    w3 = jax.random.uniform(k3, (hidden_out_dim, 1), jnp.float32, -lim3, lim3)
    b3 = jax.random.uniform(kb3, (1,), jnp.float32, -lim3, lim3)

    gamma = jnp.ones((hidden_in_dim,), jnp.float32)   # BatchNorm1d default affine
    beta = jnp.zeros((hidden_in_dim,), jnp.float32)

    raw = dict(w1=w1, b1=b1, w2=w2, b2=b2, w3=w3, b3=b3, gamma=gamma, beta=beta)
    return dict(slab=_pack_slab(lo, raw), layout=lo, raw=raw)


def critic_reference(x, action, action_opp, raw):
    """Pure-JAX reference matching the original PyTorch forward."""
    h = x @ raw["w1"] + raw["b1"][None, :]
    mean = jnp.mean(h, axis=0, keepdims=True)
    var = jnp.mean((h - mean) ** 2, axis=0, keepdims=True)
    h1 = _leaky_relu(raw["gamma"] * (h - mean) / jnp.sqrt(var + BN_EPS) + raw["beta"])
    cat = jnp.concatenate([h1, action, action_opp], axis=1)
    h2 = _leaky_relu(cat @ raw["w2"] + raw["b2"][None, :])
    return h2 @ raw["w3"] + raw["b3"][None, :]


if __name__ == "__main__":
    B = 8
    STATE_SIZE = 16
    ACTION_SIZE = 4
    HIDDEN_IN = 32
    HIDDEN_OUT = 32

    key = jax.random.PRNGKey(0)
    kx, ka, kao, kp = jax.random.split(key, 4)

    x = jax.random.normal(kx, (B, STATE_SIZE), jnp.float32)
    action = jax.random.normal(ka, (B, ACTION_SIZE), jnp.float32)
    action_opp = jax.random.normal(kao, (B, ACTION_SIZE), jnp.float32)

    params = init_params(kp, STATE_SIZE, ACTION_SIZE, HIDDEN_IN, HIDDEN_OUT)

    out = jax.block_until_ready(critic_forward(x, action, action_opp, params))
    ref = critic_reference(x, action, action_opp, params["raw"])

    assert out.shape == (B, 1), out.shape
    assert jnp.allclose(out, ref, atol=1e-4, rtol=1e-4), (out, ref)

    print("KERNEL_OK")
</pallas_src>

<mosaic_0001>
module attributes {stable_mosaic.version = 11 : i64} {
  func.func @critic_kernel(%arg0: memref<8x16xf32, #tpu.memory_space<vmem>>, %arg1: memref<8x4xf32, #tpu.memory_space<vmem>>, %arg2: memref<8x4xf32, #tpu.memory_space<vmem>>, %arg3: memref<208x128xf32, #tpu.memory_space<vmem>>, %arg4: memref<8x1xf32, #tpu.memory_space<vmem>>) attributes {dimension_semantics = [], scalar_prefetch = 0 : i64, scratch_operands = 0 : i64, tpu.core_type = #tpu.core_type<tc>} {
    %c0 = arith.constant 0 : index
    %c0_0 = arith.constant 0 : index
    %0 = vector.load %arg0[%c0, %c0_0] : memref<8x16xf32, #tpu.memory_space<vmem>>, vector<8x16xf32>
    %c0_1 = arith.constant 0 : index
    %c0_2 = arith.constant 0 : index
    %1 = vector.load %arg1[%c0_1, %c0_2] : memref<8x4xf32, #tpu.memory_space<vmem>>, vector<8x4xf32>
    %c0_3 = arith.constant 0 : index
    %c0_4 = arith.constant 0 : index
    %2 = vector.load %arg2[%c0_3, %c0_4] : memref<8x4xf32, #tpu.memory_space<vmem>>, vector<8x4xf32>
    %c0_5 = arith.constant 0 : index
    %c0_6 = arith.constant 0 : index
    %3 = vector.load %arg3[%c0_5, %c0_6] : memref<208x128xf32, #tpu.memory_space<vmem>>, vector<16x128xf32>
    %c16 = arith.constant 16 : index
    %c0_7 = arith.constant 0 : index
    %4 = vector.load %arg3[%c16, %c0_7] : memref<208x128xf32, #tpu.memory_space<vmem>>, vector<128x128xf32>
    %c144 = arith.constant 144 : index
    %c0_8 = arith.constant 0 : index
    %5 = vector.load %arg3[%c144, %c0_8] : memref<208x128xf32, #tpu.memory_space<vmem>>, vector<8x128xf32>
    %c152 = arith.constant 152 : index
    %c0_9 = arith.constant 0 : index
    %6 = vector.load %arg3[%c152, %c0_9] : memref<208x128xf32, #tpu.memory_space<vmem>>, vector<8x128xf32>
    %7 = vector.extract_strided_slice %5 {offsets = [0, 0], sizes = [4, 128], strides = [1, 1]} : vector<8x128xf32> to vector<4x128xf32>
    %8 = vector.extract_strided_slice %6 {offsets = [0, 0], sizes = [4, 128], strides = [1, 1]} : vector<8x128xf32> to vector<4x128xf32>
    %c160 = arith.constant 160 : index
    %c0_10 = arith.constant 0 : index
    %9 = vector.load %arg3[%c160, %c0_10] : memref<208x128xf32, #tpu.memory_space<vmem>>, vector<8x128xf32>
    %c168 = arith.constant 168 : index
    %c0_11 = arith.constant 0 : index
    %10 = vector.load %arg3[%c168, %c0_11] : memref<208x128xf32, #tpu.memory_space<vmem>>, vector<8x128xf32>
    %c176 = arith.constant 176 : index
    %c0_12 = arith.constant 0 : index
    %11 = vector.load %arg3[%c176, %c0_12] : memref<208x128xf32, #tpu.memory_space<vmem>>, vector<8x128xf32>
    %c184 = arith.constant 184 : index
    %c0_13 = arith.constant 0 : index
    %12 = vector.load %arg3[%c184, %c0_13] : memref<208x128xf32, #tpu.memory_space<vmem>>, vector<8x128xf32>
    %c192 = arith.constant 192 : index
    %c0_14 = arith.constant 0 : index
    %13 = vector.load %arg3[%c192, %c0_14] : memref<208x128xf32, #tpu.memory_space<vmem>>, vector<8x128xf32>
    %c200 = arith.constant 200 : index
    %c0_15 = arith.constant 0 : index
    %14 = vector.load %arg3[%c200, %c0_15] : memref<208x128xf32, #tpu.memory_space<vmem>>, vector<8x128xf32>
    %cst = arith.constant dense<0.000000e+00> : vector<8x128xf32>
    %15 = tpu.matmul %0, %3, %cst {dimension_numbers = #tpu.dot_dimension_numbers<[1], [0], [0], [1], [0, 0, 1, 1], [], []>} : vector<8x16xf32>, vector<16x128xf32>, vector<8x128xf32> -> vector<8x128xf32>
    %16 = arith.addf %15, %9 : vector<8x128xf32>
    %cst_16 = arith.constant dense<0.000000e+00> : vector<128xf32>
    %17 = vector.multi_reduction <add>, %16, %cst_16 [0] : vector<8x128xf32> to vector<128xf32>
    %18 = vector.shape_cast %17 : vector<128xf32> to vector<1x128xf32>
    %cst_17 = arith.constant 8.000000e+00 : f32
    %19 = vector.broadcast %cst_17 : f32 to vector<1x128xf32>
    %20 = arith.divf %18, %19 : vector<1x128xf32>
    %21 = vector.broadcast %20 : vector<1x128xf32> to vector<8x128xf32>
    %22 = arith.subf %16, %21 : vector<8x128xf32>
    %23 = arith.mulf %22, %22 : vector<8x128xf32>
    %cst_18 = arith.constant dense<0.000000e+00> : vector<128xf32>
    %24 = vector.multi_reduction <add>, %23, %cst_18 [0] : vector<8x128xf32> to vector<128xf32>
    %25 = vector.shape_cast %24 : vector<128xf32> to vector<1x128xf32>
    %cst_19 = arith.constant 8.000000e+00 : f32
    %26 = vector.broadcast %cst_19 : f32 to vector<1x128xf32>
    %27 = arith.divf %25, %26 : vector<1x128xf32>
    %cst_20 = arith.constant 9.99999974E-6 : f32
    %28 = vector.broadcast %cst_20 : f32 to vector<1x128xf32>
    %29 = arith.addf %27, %28 : vector<1x128xf32>
    %30 = math.rsqrt %29 : vector<1x128xf32>
    %31 = vector.broadcast %30 : vector<1x128xf32> to vector<8x128xf32>
    %32 = arith.mulf %22, %31 : vector<8x128xf32>
    %33 = arith.mulf %10, %32 : vector<8x128xf32>
    %34 = arith.addf %33, %11 : vector<8x128xf32>
    %cst_21 = arith.constant 0.000000e+00 : f32
    %35 = vector.broadcast %cst_21 : f32 to vector<8x128xf32>
    %36 = arith.cmpf ogt, %34, %35 : vector<8x128xf32>
    %cst_22 = arith.constant 0.00999999977 : f32
    %37 = vector.broadcast %cst_22 : f32 to vector<8x128xf32>
    %38 = arith.mulf %37, %34 : vector<8x128xf32>
    %39 = arith.select %36, %34, %38 : vector<8x128xi1>, vector<8x128xf32>
    %cst_23 = arith.constant dense<0.000000e+00> : vector<8x128xf32>
    %40 = tpu.matmul %39, %4, %cst_23 {dimension_numbers = #tpu.dot_dimension_numbers<[1], [0], [0], [1], [0, 0, 1, 1], [], []>} : vector<8x128xf32>, vector<128x128xf32>, vector<8x128xf32> -> vector<8x128xf32>
    %cst_24 = arith.constant dense<0.000000e+00> : vector<8x128xf32>
    %41 = tpu.matmul %1, %7, %cst_24 {dimension_numbers = #tpu.dot_dimension_numbers<[1], [0], [0], [1], [0, 0, 1, 1], [], []>} : vector<8x4xf32>, vector<4x128xf32>, vector<8x128xf32> -> vector<8x128xf32>
    %42 = arith.addf %40, %41 : vector<8x128xf32>
    %cst_25 = arith.constant dense<0.000000e+00> : vector<8x128xf32>
    %43 = tpu.matmul %2, %8, %cst_25 {dimension_numbers = #tpu.dot_dimension_numbers<[1], [0], [0], [1], [0, 0, 1, 1], [], []>} : vector<8x4xf32>, vector<4x128xf32>, vector<8x128xf32> -> vector<8x128xf32>
    %44 = arith.addf %42, %43 : vector<8x128xf32>
    %45 = arith.addf %44, %12 : vector<8x128xf32>
    %cst_26 = arith.constant 0.000000e+00 : f32
    %46 = vector.broadcast %cst_26 : f32 to vector<8x128xf32>
    %47 = arith.cmpf ogt, %45, %46 : vector<8x128xf32>
    %cst_27 = arith.constant 0.00999999977 : f32
    %48 = vector.broadcast %cst_27 : f32 to vector<8x128xf32>
    %49 = arith.mulf %48, %45 : vector<8x128xf32>
    %50 = arith.select %47, %45, %49 : vector<8x128xi1>, vector<8x128xf32>
    %51 = arith.mulf %50, %13 : vector<8x128xf32>
    %cst_28 = arith.constant dense<0.000000e+00> : vector<8xf32>
    %52 = vector.multi_reduction <add>, %51, %cst_28 [1] : vector<8x128xf32> to vector<8xf32>
    %53 = vector.shape_cast %52 : vector<8xf32> to vector<8x1xf32>
    %54 = vector.extract_strided_slice %14 {offsets = [0, 0], sizes = [8, 1], strides = [1, 1]} : vector<8x128xf32> to vector<8x1xf32>
    %55 = arith.addf %53, %54 : vector<8x1xf32>
    %c0_29 = arith.constant 0 : index
    %c0_30 = arith.constant 0 : index
    %56 = vector.load %arg4[%c0_29, %c0_30] : memref<8x1xf32, #tpu.memory_space<vmem>>, vector<8x1xf32>
    tpu.vector_store %arg4[%c0_29, %c0_30], %55 {strides = array<i32>} : memref<8x1xf32, #tpu.memory_space<vmem>>, vector<8x1xf32>,
    return
  }
}

</mosaic_0001>

<llo_original>
// kernel: tpu_custom_call.1
$region0: #{tpu_custom_call.1}
  #allocation0 [shape = 'u32[]', space=smem, size = 0x4, offset = 0x4, fixed_abs, tag = 'smem constant byte address 0x4 - core index']
  #allocation1 [shape = 'u32[144,128]{1,0:T(1,128)}', space=vmem, size = 0x12000, scoped, tag = 'internal scratch']
  %s0 = inlined_call_operand.vmem [shape: f32[8,16], index: 0, kind: input, shape index: {}]
  %s1 = inlined_call_operand.vmem [shape: f32[8,4], index: 1, kind: input, shape index: {}]
  %s2 = inlined_call_operand.vmem [shape: f32[8,4], index: 2, kind: input, shape index: {}]
  %s3 = inlined_call_operand.hbm [shape: f32[208,128], index: 3, kind: input, shape index: {}]
  %s4 = inlined_call_operand.vmem [shape: f32[8,1], index: 4, kind: output, shape index: {}]
  %s5 = sld [smem:[#allocation0]]
  $region30: #{tpu_custom_call.1} parent=0
    _
  %s7 = ssub.s32 1, %s5
  %s8 = scalar_select 0, %s7, %s5
  $region1: #{tpu_custom_call.1} parent=0
    #allocation2 [shape = 'u8[106496]{0}', space=vmem, size = 0x1a000, scoped, tag = 'input window, operand 3, single buffered']
    #allocation3 [shape = 's32[1]{0}', space=sflag, size = 0x4, scoped, tag = 'scoped memory for tpu_custom_call.1']
    %9 = vsyncpa [#allocation3], 0
    // Predicated region
    $region2: #{tpu_custom_call.1} parent=1 // pred_check
      _
    $region3: #{tpu_custom_call.1} parent=1 // pred_check_branch
      %11 = sbr.rel (0) target = $region5
    $region4: #{tpu_custom_call.1} parent=1 // pred_region
      _
    $region5: #{tpu_custom_call.1} parent=1 // pred_fallthru
      _
    // Predicated region
    $region6: #{tpu_custom_call.1} parent=1 // pred_check
      _
    $region7: #{tpu_custom_call.1} parent=1 // pred_check_branch
      %13 = sbr.rel (0) target = $region9
    $region8: #{tpu_custom_call.1} parent=1 // pred_region
      _
    $region9: #{tpu_custom_call.1} parent=1 // pred_fallthru
      _
    // Predicated region
    $region10: #{tpu_custom_call.1} parent=1 // pred_check
      _
    $region11: #{tpu_custom_call.1} parent=1 // pred_check_branch
      %15 = sbr.rel (0) target = $region13
    $region12: #{tpu_custom_call.1} parent=1 // pred_region
      _
    $region13: #{tpu_custom_call.1} parent=1 // pred_fallthru
      _
    // Predicated region
    $region14: #{tpu_custom_call.1} parent=1 // pred_check
      _
    $region15: #{tpu_custom_call.1} parent=1 // pred_check_branch
      %17 = sbr.rel (0) target = $region17
    $region16: #{tpu_custom_call.1} parent=1 // pred_region
      %s19 = ssub.s32 3328, 3328
      %20 = vsyncadd [#allocation3], %s19
      %s21 = sshll.u32 [#allocation2], 4
      %s22 = int_to_ptr.vmem [resolvable:$true] %s21
      %27 = dma.hbm_to_vmem [thread:$0]  %s3, 3328, %s22, [#allocation3], 128, 128, 8
    $region17: #{tpu_custom_call.1} parent=1 // pred_fallthru
      _
    // Predicated region
    $region18: #{tpu_custom_call.1} parent=1 // pred_check
      _
    $region19: #{tpu_custom_call.1} parent=1 // pred_check_branch
      %29 = sbr.rel (0) target = $region21
    $region20: #{tpu_custom_call.1} parent=1 // pred_region
      %30 = dma.done [#allocation3], 3328
    $region21: #{tpu_custom_call.1} parent=1 // pred_fallthru
      _
    %v31 = vld [vmem:[%s0] sm:$0xff]
    %v32 = vld [vmem:[%s1] sm:$0xff]
    %v33 = vld [vmem:[%s2] sm:$0xff]
    %v34 = vld [vmem:[#allocation2] sm:$0xff]
    %v35 = vld [vmem:[#allocation2 + $0x8] sm:$0xff]
    %v36 = vld [vmem:[#allocation2 + $0x10] sm:$0xff]
    %v37 = vld [vmem:[#allocation2 + $0x18] sm:$0xff]
    %v38 = vld [vmem:[#allocation2 + $0x20] sm:$0xff]
    %v39 = vld [vmem:[#allocation2 + $0x28] sm:$0xff]
    %v40 = vld [vmem:[#allocation2 + $0x30] sm:$0xff]
    %v41 = vld [vmem:[#allocation2 + $0x38] sm:$0xff]
    %v42 = vld [vmem:[#allocation2 + $0x40] sm:$0xff]
    %v43 = vld [vmem:[#allocation2 + $0x48] sm:$0xff]
    %v44 = vld [vmem:[#allocation2 + $0x50] sm:$0xff]
    %v45 = vld [vmem:[#allocation2 + $0x58] sm:$0xff]
    %v46 = vld [vmem:[#allocation2 + $0x60] sm:$0xff]
    %v47 = vld [vmem:[#allocation2 + $0x68] sm:$0xff]
    %v48 = vld [vmem:[#allocation2 + $0x70] sm:$0xff]
    %v49 = vld [vmem:[#allocation2 + $0x78] sm:$0xff]
    %v50 = vld [vmem:[#allocation2 + $0x80] sm:$0xff]
    %v51 = vld [vmem:[#allocation2 + $0x88] sm:$0xff]
    %v52 = vld [vmem:[#allocation2 + $0x90] sm:$0xff]
    %v53 = vld [vmem:[#allocation2 + $0x98] sm:$0xff]
    %v54 = vld [vmem:[#allocation2 + $0xa0] sm:$0xff]
    %v55 = vld [vmem:[#allocation2 + $0xa8] sm:$0xff]
    %v56 = vld [vmem:[#allocation2 + $0xb0] sm:$0xff]
    %v57 = vld [vmem:[#allocation2 + $0xb8] sm:$0xff]
    %v58 = vld [vmem:[#allocation2 + $0xc0] sm:$0xff]
    %v59 = vld [vmem:[#allocation2 + $0xc8] sm:$0xff]
    %vm60 = vcmask 130048
    %v62 = vsel %vm60, %v31, 0
    %64 = vmatprep.subr.mxu0 0.0
    %65 = vmatpush1.msra.mxu0 %v34
    %66 = vmatprep.subr.mxu0 0.0
    %67 = vmatpush1.msra.mxu0 %v35
    %68 = vmatprep.subr.mxu0 0.0
    %69 = vmatpush1.msra.mxu0 0.0
    %70 = vmatprep.subr.mxu0 0.0
    %71 = vmatpush1.msra.mxu0 0.0
    %72 = vmatprep.subr.mxu0 0.0
    %73 = vmatpush1.msra.mxu0 0.0
    %74 = vmatprep.subr.mxu0 0.0
    %75 = vmatpush1.msra.mxu0 0.0
    %76 = vmatprep.subr.mxu0 0.0
    %77 = vmatpush1.msra.mxu0 0.0
    %78 = vmatprep.subr.mxu0 0.0
    %79 = vmatpush1.msra.mxu0 0.0
    %80 = vmatprep.subr.mxu0 0.0
    %81 = vmatpush1.msra.mxu0 0.0
    %82 = vmatprep.subr.mxu0 0.0
    %83 = vmatpush1.msra.mxu0 0.0
    %84 = vmatprep.subr.mxu0 0.0
    %85 = vmatpush1.msra.mxu0 0.0
    %86 = vmatprep.subr.mxu0 0.0
    %87 = vmatpush1.msra.mxu0 0.0
    %88 = vmatprep.subr.mxu0 0.0
    %89 = vmatpush1.msra.mxu0 0.0
    %90 = vmatprep.subr.mxu0 0.0
    %91 = vmatpush1.msra.mxu0 0.0
    %92 = vmatprep.subr.mxu0 0.0
    %93 = vmatpush1.msra.mxu0 0.0
    %94 = vmatprep.subr.mxu0 0.0
    %95 = vmatpush1.msra.mxu0 0.0
    %96 = vmatprep.subr.mxu0 0.0
    %97 = vmatpush1.msra.mxu0 0.0
    %98 = vmatprep.subr.mxu0 0.0
    %99 = vmatpush1.msra.mxu0 0.0
    %100 = vmatprep.subr.mxu0 0.0
    %101 = vmatpush1.msra.mxu0 0.0
    %102 = vmatprep.subr.mxu0 0.0
    %103 = vmatpush1.msra.mxu0 0.0
    %104 = vmatprep.subr.mxu0 0.0
    %105 = vmatpush1.msra.mxu0 0.0
    %106 = vmatprep.subr.mxu0 0.0
    %107 = vmatpush1.msra.mxu0 0.0
    %108 = vmatprep.subr.mxu0 0.0
    %109 = vmatpush1.msra.mxu0 0.0
    %110 = vmatprep.subr.mxu0 0.0
    %111 = vmatpush1.msra.mxu0 0.0
    %112 = vmatprep.subr.mxu0 0.0
    %113 = vmatpush1.msra.mxu0 0.0
    %114 = vmatprep.subr.mxu0 0.0
    %115 = vmatpush1.msra.mxu0 0.0
    %116 = vmatprep.subr.mxu0 0.0
    %117 = vmatpush1.msra.mxu0 0.0
    %118 = vmatprep.subr.mxu0 0.0
    %119 = vmatpush1.msra.mxu0 0.0
    %120 = vmatprep.subr.mxu0 0.0
    %121 = vmatpush1.msra.mxu0 0.0
    %122 = vmatprep.subr.mxu0 0.0
    %123 = vmatpush1.msra.mxu0 0.0
    %124 = vmatprep.subr.mxu0 0.0
    %125 = vmatpush1.msra.mxu0 0.0
    %126 = vmatprep.subr.mxu0 0.0
    %127 = vmatpush1.msra.mxu0 0.0
    %128 = vmatprep.mubr.f32.mxu0 0.0
    %129 = vmatmul.mubr.f32.gmra.mrb[0].mxu0 %v62
    %v130 = vpop.f32.mrb[0].mxu0
    %v131 = vadd.f32 %v54, %v130
    %v132 = vpop.f32.mrb[0].mxu0
    %133 = vdwg.mxu0
    %v134 = vrot.slane %v131, 4
    %v135 = vadd.f32 %v131, %v134
    %v136 = vrot.slane %v135, 2
    %v137 = vadd.f32 %v135, %v136
    %v138 = vrot.slane %v137, 1
    %v139 = vadd.f32 %v137, %v138
    %v140 = vrcp.pop 8.0
    %v141 = vmul.f32 %v139, %v140
    %v142 = vsub.f32 %v131, %v141
    %v143 = vmul.f32 %v142, %v142
    %v144 = vrot.slane %v143, 4
    %v145 = vadd.f32 %v143, %v144
    %v146 = vrot.slane %v145, 2
    %v147 = vadd.f32 %v145, %v146
    %v148 = vrot.slane %v147, 1
    %v149 = vadd.f32 %v147, %v148
    %v150 = vmul.f32 %v149, %v140
    %v151 = vadd.f32 %v150, 1e-05
    %v152 = vrsqrt.pop %v151
    %v153 = vmul.f32 %v142, %v152
    %v154 = vmul.f32 %v55, %v153
    %v155 = vadd.f32 %v154, %v56
    %vm156 = vcmp.gt.f32.partialorder %v155, 0.0
    %v157 = vmul.f32 %v155, 0.01
    %v158 = vsel %vm156, %v155, %v157
    %vm159 = vcmask 31744
    %v161 = vsel %vm159, %v32, 0
    %vm163 = vcmask 1043456
    %v165 = vsel %vm163, %v52, 0
    %167 = vmatprep.subr.mxu0 0.0
    %168 = vmatpush1.msra.mxu0 %v165
    %169 = vmatprep.subr.mxu0 0.0
    %170 = vmatpush1.msra.mxu0 0.0
    %171 = vmatprep.subr.mxu0 0.0
    %172 = vmatpush1.msra.mxu0 0.0
    %173 = vmatprep.subr.mxu0 0.0
    %174 = vmatpush1.msra.mxu0 0.0
    %175 = vmatprep.subr.mxu0 0.0
    %176 = vmatpush1.msra.mxu0 0.0
    %177 = vmatprep.subr.mxu0 0.0
    %178 = vmatpush1.msra.mxu0 0.0
    %179 = vmatprep.subr.mxu0 0.0
    %180 = vmatpush1.msra.mxu0 0.0
    %181 = vmatprep.subr.mxu0 0.0
    %182 = vmatpush1.msra.mxu0 0.0
    %183 = vmatprep.subr.mxu0 0.0
    %184 = vmatpush1.msra.mxu0 0.0
    %185 = vmatprep.subr.mxu0 0.0
    %186 = vmatpush1.msra.mxu0 0.0
    %187 = vmatprep.subr.mxu0 0.0
    %188 = vmatpush1.msra.mxu0 0.0
    %189 = vmatprep.subr.mxu0 0.0
    %190 = vmatpush1.msra.mxu0 0.0
    %191 = vmatprep.subr.mxu0 0.0
    %192 = vmatpush1.msra.mxu0 0.0
    %193 = vmatprep.subr.mxu0 0.0
    %194 = vmatpush1.msra.mxu0 0.0
    %195 = vmatprep.subr.mxu0 0.0
    %196 = vmatpush1.msra.mxu0 0.0
    %197 = vmatprep.subr.mxu0 0.0
    %198 = vmatpush1.msra.mxu0 0.0
    %199 = vmatprep.subr.mxu0 0.0
    %200 = vmatpush1.msra.mxu0 0.0
    %201 = vmatprep.subr.mxu0 0.0
    %202 = vmatpush1.msra.mxu0 0.0
    %203 = vmatprep.subr.mxu0 0.0
    %204 = vmatpush1.msra.mxu0 0.0
    %205 = vmatprep.subr.mxu0 0.0
    %206 = vmatpush1.msra.mxu0 0.0
    %207 = vmatprep.subr.mxu0 0.0
    %208 = vmatpush1.msra.mxu0 0.0
    %209 = vmatprep.subr.mxu0 0.0
    %210 = vmatpush1.msra.mxu0 0.0
    %211 = vmatprep.subr.mxu0 0.0
    %212 = vmatpush1.msra.mxu0 0.0
    %213 = vmatprep.subr.mxu0 0.0
    %214 = vmatpush1.msra.mxu0 0.0
    %215 = vmatprep.subr.mxu0 0.0
    %216 = vmatpush1.msra.mxu0 0.0
    %217 = vmatprep.subr.mxu0 0.0
    %218 = vmatpush1.msra.mxu0 0.0
    %219 = vmatprep.subr.mxu0 0.0
    %220 = vmatpush1.msra.mxu0 0.0
    %221 = vmatprep.subr.mxu0 0.0
    %222 = vmatpush1.msra.mxu0 0.0
    %223 = vmatprep.subr.mxu0 0.0
    %224 = vmatpush1.msra.mxu0 0.0
    %225 = vmatprep.subr.mxu0 0.0
    %226 = vmatpush1.msra.mxu0 0.0
    %227 = vmatprep.subr.mxu0 0.0
    %228 = vmatpush1.msra.mxu0 0.0
    %229 = vmatprep.subr.mxu0 0.0
    %230 = vmatpush1.msra.mxu0 0.0
    %231 = vmatprep.mubr.f32.mxu0 0.0
    %232 = vmatmul.mubr.f32.gmra.mrb[0].mxu0 %v161
    %v233 = vpop.f32.mrb[0].mxu0
    %v234 = vadd.f32 0.0, %v233
    %v235 = vpop.f32.mrb[0].mxu0
    %236 = vdwg.mxu0
    %237 = vmatprep.subr.mxu0 0.0
    %238 = vmatpush1.msra.mxu0 %v36
    %239 = vmatprep.subr.mxu0 0.0
    %240 = vmatpush1.msra.mxu0 %v37
    %241 = vmatprep.subr.mxu0 0.0
    %242 = vmatpush1.msra.mxu0 %v38
    %243 = vmatprep.subr.mxu0 0.0
    %244 = vmatpush1.msra.mxu0 %v39
    %245 = vmatprep.subr.mxu0 0.0
    %246 = vmatpush1.msra.mxu0 %v40
    %247 = vmatprep.subr.mxu0 0.0
    %248 = vmatpush1.msra.mxu0 %v41
    %249 = vmatprep.subr.mxu0 0.0
    %250 = vmatpush1.msra.mxu0 %v42
    %251 = vmatprep.subr.mxu0 0.0
    %252 = vmatpush1.msra.mxu0 %v43
    %253 = vmatprep.subr.mxu0 0.0
    %254 = vmatpush1.msra.mxu0 %v44
    %255 = vmatprep.subr.mxu0 0.0
    %256 = vmatpush1.msra.mxu0 %v45
    %257 = vmatprep.subr.mxu0 0.0
    %258 = vmatpush1.msra.mxu0 %v46
    %259 = vmatprep.subr.mxu0 0.0
    %260 = vmatpush1.msra.mxu0 %v47
    %261 = vmatprep.subr.mxu0 0.0
    %262 = vmatpush1.msra.mxu0 %v48
    %263 = vmatprep.subr.mxu0 0.0
    %264 = vmatpush1.msra.mxu0 %v49
    %265 = vmatprep.subr.mxu0 0.0
    %266 = vmatpush1.msra.mxu0 %v50
    %267 = vmatprep.subr.mxu0 0.0
    %268 = vmatpush1.msra.mxu0 %v51
    %269 = vmatprep.subr.mxu0 0.0
    %270 = vmatpush1.msra.mxu0 0.0
    %271 = vmatprep.subr.mxu0 0.0
    %272 = vmatpush1.msra.mxu0 0.0
    %273 = vmatprep.subr.mxu0 0.0
    %274 = vmatpush1.msra.mxu0 0.0
    %275 = vmatprep.subr.mxu0 0.0
    %276 = vmatpush1.msra.mxu0 0.0
    %277 = vmatprep.subr.mxu0 0.0
    %278 = vmatpush1.msra.mxu0 0.0
    %279 = vmatprep.subr.mxu0 0.0
    %280 = vmatpush1.msra.mxu0 0.0
    %281 = vmatprep.subr.mxu0 0.0
    %282 = vmatpush1.msra.mxu0 0.0
    %283 = vmatprep.subr.mxu0 0.0
    %284 = vmatpush1.msra.mxu0 0.0
    %285 = vmatprep.subr.mxu0 0.0
    %286 = vmatpush1.msra.mxu0 0.0
    %287 = vmatprep.subr.mxu0 0.0
    %288 = vmatpush1.msra.mxu0 0.0
    %289 = vmatprep.subr.mxu0 0.0
    %290 = vmatpush1.msra.mxu0 0.0
    %291 = vmatprep.subr.mxu0 0.0
    %292 = vmatpush1.msra.mxu0 0.0
    %293 = vmatprep.subr.mxu0 0.0
    %294 = vmatpush1.msra.mxu0 0.0
    %295 = vmatprep.subr.mxu0 0.0
    %296 = vmatpush1.msra.mxu0 0.0
    %297 = vmatprep.subr.mxu0 0.0
    %298 = vmatpush1.msra.mxu0 0.0
    %299 = vmatprep.subr.mxu0 0.0
    %300 = vmatpush1.msra.mxu0 0.0
    %301 = vmatprep.mubr.f32.mxu0 0.0
    %302 = vmatmul.mubr.f32.gmra.mrb[0].mxu0 %v158
    %v303 = vpop.f32.mrb[0].mxu0
    %v304 = vadd.f32 %v234, %v303
    %v305 = vpop.f32.mrb[0].mxu0
    %306 = vdwg.mxu0
    %v308 = vsel %vm159, %v33, 0
    %v311 = vsel %vm163, %v53, 0
    %313 = vmatprep.subr.mxu0 0.0
    %314 = vmatpush1.msra.mxu0 %v311
    %315 = vmatprep.subr.mxu0 0.0
    %316 = vmatpush1.msra.mxu0 0.0
    %317 = vmatprep.subr.mxu0 0.0
    %318 = vmatpush1.msra.mxu0 0.0
    %319 = vmatprep.subr.mxu0 0.0
    %320 = vmatpush1.msra.mxu0 0.0
    %321 = vmatprep.subr.mxu0 0.0
    %322 = vmatpush1.msra.mxu0 0.0
    %323 = vmatprep.subr.mxu0 0.0
    %324 = vmatpush1.msra.mxu0 0.0
    %325 = vmatprep.subr.mxu0 0.0
    %326 = vmatpush1.msra.mxu0 0.0
    %327 = vmatprep.subr.mxu0 0.0
    %328 = vmatpush1.msra.mxu0 0.0
    %329 = vmatprep.subr.mxu0 0.0
    %330 = vmatpush1.msra.mxu0 0.0
    %331 = vmatprep.subr.mxu0 0.0
    %332 = vmatpush1.msra.mxu0 0.0
    %333 = vmatprep.subr.mxu0 0.0
    %334 = vmatpush1.msra.mxu0 0.0
    %335 = vmatprep.subr.mxu0 0.0
    %336 = vmatpush1.msra.mxu0 0.0
    %337 = vmatprep.subr.mxu0 0.0
    %338 = vmatpush1.msra.mxu0 0.0
    %339 = vmatprep.subr.mxu0 0.0
    %340 = vmatpush1.msra.mxu0 0.0
    %341 = vmatprep.subr.mxu0 0.0
    %342 = vmatpush1.msra.mxu0 0.0
    %343 = vmatprep.subr.mxu0 0.0
    %344 = vmatpush1.msra.mxu0 0.0
    %345 = vmatprep.subr.mxu0 0.0
    %346 = vmatpush1.msra.mxu0 0.0
    %347 = vmatprep.subr.mxu0 0.0
    %348 = vmatpush1.msra.mxu0 0.0
    %349 = vmatprep.subr.mxu0 0.0
    %350 = vmatpush1.msra.mxu0 0.0
    %351 = vmatprep.subr.mxu0 0.0
    %352 = vmatpush1.msra.mxu0 0.0
    %353 = vmatprep.subr.mxu0 0.0
    %354 = vmatpush1.msra.mxu0 0.0
    %355 = vmatprep.subr.mxu0 0.0
    %356 = vmatpush1.msra.mxu0 0.0
    %357 = vmatprep.subr.mxu0 0.0
    %358 = vmatpush1.msra.mxu0 0.0
    %359 = vmatprep.subr.mxu0 0.0
    %360 = vmatpush1.msra.mxu0 0.0
    %361 = vmatprep.subr.mxu0 0.0
    %362 = vmatpush1.msra.mxu0 0.0
    %363 = vmatprep.subr.mxu0 0.0
    %364 = vmatpush1.msra.mxu0 0.0
    %365 = vmatprep.subr.mxu0 0.0
    %366 = vmatpush1.msra.mxu0 0.0
    %367 = vmatprep.subr.mxu0 0.0
    %368 = vmatpush1.msra.mxu0 0.0
    %369 = vmatprep.subr.mxu0 0.0
    %370 = vmatpush1.msra.mxu0 0.0
    %371 = vmatprep.subr.mxu0 0.0
    %372 = vmatpush1.msra.mxu0 0.0
    %373 = vmatprep.subr.mxu0 0.0
    %374 = vmatpush1.msra.mxu0 0.0
    %375 = vmatprep.subr.mxu0 0.0
    %376 = vmatpush1.msra.mxu0 0.0
    %377 = vmatprep.mubr.f32.mxu0 0.0
    %378 = vmatmul.mubr.f32.gmra.mrb[0].mxu0 %v308
    %v379 = vpop.f32.mrb[0].mxu0
    %v380 = vadd.f32 0.0, %v379
    %v381 = vpop.f32.mrb[0].mxu0
    %382 = vdwg.mxu0
    %v383 = vadd.f32 %v304, %v380
    %v384 = vadd.f32 %v383, %v57
    %vm385 = vcmp.gt.f32.partialorder %v384, 0.0
    %v386 = vmul.f32 %v384, 0.01
    %v387 = vsel %vm385, %v384, %v386
    %v388 = vmul.f32 %v387, %v58
    %389 = vadd.xlane.f32.xlu0 %v388
    %v390 = vpop.xlane.xlu0 %389
    %v391 = vadd.f32 %v390, %v59
    %vm392 = vcmask 7168
    %393 = vst.msk [vmem:[%s4] sm:$0xff] %vm392, %v391
    // Predicated region
    $region22: #{tpu_custom_call.1} parent=1 // pred_check
      _
    $region23: #{tpu_custom_call.1} parent=1 // pred_check_branch
      %395 = sbr.rel (0) target = $region25
    $region24: #{tpu_custom_call.1} parent=1 // pred_region
      _
    $region25: #{tpu_custom_call.1} parent=1 // pred_fallthru
      _
    // Predicated region
    $region26: #{tpu_custom_call.1} parent=1 // pred_check
      _
    $region27: #{tpu_custom_call.1} parent=1 // pred_check_branch
      %397 = sbr.rel (0) target = $region29
    $region28: #{tpu_custom_call.1} parent=1 // pred_region
      _
    $region29: #{tpu_custom_call.1} parent=1 // pred_fallthru
      _
    %398 = vsyncpa [#allocation3], 1

</llo_original>
